<compile_context>
chip_gen: v7x
topology: tpu7x:2x2x1
jax: 0.10.0
libtpu: 0.0.40
codegen_flags: <defaults>
</compile_context>

<pallas_src>
import functools
import math

import jax
import jax.numpy as jnp
from jax import lax
from jax.experimental import pallas as pl
from jax.experimental.pallas import tpu as pltpu


def _rup(x, m):
    return ((x + m - 1) // m) * m


def _pick_l_tile(L, C, n_streams, budget_bytes=8 << 20):
    """Largest L-tile (divisor of L; multiple of 8 unless == L) whose f32 block
    footprint across n_streams stays under budget."""
    row_bytes = C * 4 * n_streams
    if L * row_bytes <= budget_bytes or L <= 8:
        return L
    t = max(8, (budget_bytes // row_bytes) // 8 * 8)
    t = min(t, L)
    while t >= 8:
        if L % t == 0:
            return t
        t -= 8
    return L


# ------------------------- fused conv + BN (+ReLU) kernel -------------------------
# Full-K im2col matmul: grid = (M/tm, Cout_p/tn), no reduction axis (K in one block).

def _conv_bn_kernel(a_ref, b_ref, s_ref, t_ref, o_ref, *, relu):
    acc = jnp.dot(a_ref[...], b_ref[...], preferred_element_type=jnp.float32)
    y = acc * s_ref[...] + t_ref[...]          # fused BatchNorm epilogue (f32)
    if relu:
        y = jnp.maximum(y, 0.0)
    o_ref[...] = y.astype(o_ref.dtype)


@functools.lru_cache(maxsize=None)
def _conv_bn_call(Mp, K, Np, tm, tn, relu, out_dtype_name):
    out_dtype = jnp.dtype(out_dtype_name)
    kernel = functools.partial(_conv_bn_kernel, relu=relu)
    f = pl.pallas_call(
        kernel,
        out_shape=jax.ShapeDtypeStruct((Mp, Np), out_dtype),
        grid_spec=pltpu.PrefetchScalarGridSpec(
            num_scalar_prefetch=0,
            grid=(Mp // tm, Np // tn),
            in_specs=[
                pl.BlockSpec((tm, K), lambda i, j: (i, 0)),   # A patches (bf16)
                pl.BlockSpec((K, tn), lambda i, j: (0, j)),   # W (bf16)
                pl.BlockSpec((1, tn), lambda i, j: (0, j)),   # BN scale (f32)
                pl.BlockSpec((1, tn), lambda i, j: (0, j)),   # BN shift (f32)
            ],
            out_specs=pl.BlockSpec((tm, tn), lambda i, j: (i, j)),
        ),
        compiler_params=pltpu.CompilerParams(
            dimension_semantics=("parallel", "parallel")),
    )
    return jax.jit(f)


def conv_bn(x, w, bn, *, stride=1, padding=0, relu=False,
            out_dtype=jnp.float32, eps=1e-5):
    """Fused NHWC conv (KHxKW) + BatchNorm (+ReLU).  w bf16 (HWIO)."""
    N, H, W, Cin = x.shape
    KH, KW, Cin_w, Cout = w.shape
    assert Cin == Cin_w
    if padding:
        x = jnp.pad(x, ((0, 0), (padding, padding), (padding, padding), (0, 0)))
    Hp, Wp = H + 2 * padding, W + 2 * padding
    Ho = (Hp - KH) // stride + 1
    Wo = (Wp - KW) // stride + 1
    M = N * Ho * Wo
    KK = KH * KW
    K = KK * Cin

    # im2col in bf16: column order (kh, kw, cin) matching w.reshape(K, Cout).
    xb = x.astype(jnp.bfloat16)
    if KK == 1:
        A = xb[:, ::stride, ::stride, :].reshape(M, Cin)
    else:
        taps = []
        for kh in range(KH):
            for kw in range(KW):
                taps.append(lax.slice(
                    xb, (0, kh, kw, 0),
                    (N, kh + stride * (Ho - 1) + 1, kw + stride * (Wo - 1) + 1, Cin),
                    (1, stride, stride, 1)))
        A = jnp.stack(taps, axis=3).reshape(M, K)        # (N,Ho,Wo,KK,Cin) -> (M,K)

    gamma, beta, mean, var = bn
    inv = lax.rsqrt(var + eps)
    scale = (gamma * inv).astype(jnp.float32)
    shift = (beta - mean * gamma * inv).astype(jnp.float32)

    # Lane-dense output channels (no-op for 128/256/512 planes).
    Cout_p = _rup(Cout, 128)
    B = w.reshape(K, Cout)
    if Cout_p != Cout:
        B = jnp.pad(B, ((0, 0), (0, Cout_p - Cout)))
        scale = jnp.pad(scale, (0, Cout_p - Cout))
        shift = jnp.pad(shift, (0, Cout_p - Cout))
    scale = scale.reshape(1, Cout_p)
    shift = shift.reshape(1, Cout_p)

    # tn = full Cout_p (largest 128-multiple divisor, capped at 512).
    tn = 128
    for cand in (512, 384, 256, 128):
        if cand <= Cout_p and Cout_p % cand == 0:
            tn = cand
            break

    # tm up to 512; small M split in two so the parallel i axis has >= 2 tiles (v7x).
    tm = max(8, min(512, _rup(-(-M // 2), 8)))

    out_itemsize = jnp.dtype(out_dtype).itemsize

    def _vmem_bytes(tm_):   # double-buffered A/B + double-buffered output block
        return 2 * (tm_ * K * 2 + K * tn * 2) + 2 * tm_ * tn * out_itemsize

    while tm > 8 and _vmem_bytes(tm) > (24 << 20):
        tm = max(8, _rup(tm // 2, 8))

    Mp = _rup(M, tm)
    if Mp != M:
        A = jnp.pad(A, ((0, Mp - M), (0, 0)))   # padded rows evaluate to BN shift; sliced off below

    y = _conv_bn_call(Mp, K, Cout_p, tm, tn, bool(relu),
                      jnp.dtype(out_dtype).name)(A, B, scale, shift)
    if Mp != M:
        y = y[:M]
    if Cout_p != Cout:
        y = y[:, :Cout]
    return y.reshape(N, Ho, Wo, Cout)


# ----------------------- dual global pool (avg + max, one pass) -------------------
# grid = (N, L/tl); L is the reduction axis (sum/max accumulated in VMEM scratch).

def _dual_pool_kernel(x_ref, avg_ref, max_ref, sum_sc, max_sc, *, inv_l):
    l = pl.program_id(1)

    @pl.when(l == 0)
    def _():
        sum_sc[...] = jnp.zeros_like(sum_sc)
        max_sc[...] = jnp.full_like(max_sc, -jnp.inf)

    x = x_ref[...]                                            # (1, tl, C) f32
    sum_sc[...] += jnp.sum(x, axis=1, keepdims=True)
    max_sc[...] = jnp.maximum(max_sc[...], jnp.max(x, axis=1, keepdims=True))

    @pl.when(l == pl.num_programs(1) - 1)
    def _():
        avg_ref[...] = sum_sc[...] * inv_l                    # divide by true L
        max_ref[...] = max_sc[...]


@functools.lru_cache(maxsize=None)
def _dual_pool_call(N, L, C, tl):
    kernel = functools.partial(_dual_pool_kernel, inv_l=1.0 / L)
    f = pl.pallas_call(
        kernel,
        out_shape=(jax.ShapeDtypeStruct((N, 1, C), jnp.float32),
                   jax.ShapeDtypeStruct((N, 1, C), jnp.float32)),
        grid_spec=pltpu.PrefetchScalarGridSpec(
            num_scalar_prefetch=0, grid=(N, L // tl),
            in_specs=[pl.BlockSpec((1, tl, C), lambda n, l: (n, l, 0))],
            out_specs=(pl.BlockSpec((1, 1, C), lambda n, l: (n, 0, 0)),
                       pl.BlockSpec((1, 1, C), lambda n, l: (n, 0, 0))),
            scratch_shapes=[pltpu.VMEM((1, 1, C), jnp.float32),
                            pltpu.VMEM((1, 1, C), jnp.float32)]),
        compiler_params=pltpu.CompilerParams(
            dimension_semantics=("parallel", "arbitrary")),
    )
    return jax.jit(f)


# ---------- fused channel-attention apply + spatial mean/max (over C) -------------
# Reads `out` once; the full xca map is never written to HBM.

def _ca_pool_kernel(x_ref, ca_ref, avg_ref, max_ref, *, inv_c):
    x = x_ref[...] * ca_ref[...]                              # (1, tl, C) f32
    avg_ref[...] = jnp.sum(x, axis=-1, keepdims=True) * inv_c
    max_ref[...] = jnp.max(x, axis=-1, keepdims=True)


@functools.lru_cache(maxsize=None)
def _ca_pool_call(N, L, C, tl):
    kernel = functools.partial(_ca_pool_kernel, inv_c=1.0 / C)
    f = pl.pallas_call(
        kernel,
        out_shape=(jax.ShapeDtypeStruct((N, L, 1), jnp.float32),
                   jax.ShapeDtypeStruct((N, L, 1), jnp.float32)),
        grid_spec=pltpu.PrefetchScalarGridSpec(
            num_scalar_prefetch=0, grid=(N, L // tl),
            in_specs=[pl.BlockSpec((1, tl, C), lambda n, l: (n, l, 0)),
                      pl.BlockSpec((1, 1, C), lambda n, l: (n, 0, 0))],
            out_specs=(pl.BlockSpec((1, tl, 1), lambda n, l: (n, l, 0)),
                       pl.BlockSpec((1, tl, 1), lambda n, l: (n, l, 0)))),
        compiler_params=pltpu.CompilerParams(
            dimension_semantics=("parallel", "parallel")),
    )
    return jax.jit(f)


# --------------- fused CBAM apply + residual add + final ReLU kernel --------------

def _cbam_residual_kernel(x_ref, ca_ref, sa_ref, idn_ref, o_ref):
    y = x_ref[...] * ca_ref[...] * sa_ref[...] + idn_ref[...]
    o_ref[...] = jnp.maximum(y, 0.0)


@functools.lru_cache(maxsize=None)
def _cbam_residual_call(N, L, C, tl):
    f = pl.pallas_call(
        _cbam_residual_kernel,
        out_shape=jax.ShapeDtypeStruct((N, L, C), jnp.float32),
        grid_spec=pltpu.PrefetchScalarGridSpec(
            num_scalar_prefetch=0, grid=(N, L // tl),
            in_specs=[pl.BlockSpec((1, tl, C), lambda n, l: (n, l, 0)),
                      pl.BlockSpec((1, 1, C), lambda n, l: (n, 0, 0)),
                      pl.BlockSpec((1, tl, 1), lambda n, l: (n, l, 0)),
                      pl.BlockSpec((1, tl, C), lambda n, l: (n, l, 0))],
            out_specs=pl.BlockSpec((1, tl, C), lambda n, l: (n, l, 0))),
        compiler_params=pltpu.CompilerParams(
            dimension_semantics=("parallel", "parallel")),
    )
    return jax.jit(f)


# --------------------------------- CBAM attention ---------------------------------

def cbam_attention(out, p):
    """Returns (ca, sa): channel attention (N,C) and spatial attention (N,H,W,1)."""
    N, H, W, C = out.shape
    L = H * W
    out_l = out.reshape(N, L, C)

    tl = _pick_l_tile(L, C, 1)
    avg, mx = _dual_pool_call(N, L, C, tl)(out_l)
    avg = avg.reshape(N, C)
    mx = mx.reshape(N, C)

    # Tiny shared MLP (C -> C/r -> C): plain XLA; padding it to MXU tiles would
    # waste >95% of the work (per perf review).
    h1 = jnp.maximum(avg @ p["mlp_w1"], 0.0)
    h2 = jnp.maximum(mx @ p["mlp_w1"], 0.0)
    ca = jax.nn.sigmoid(h1 @ p["mlp_w2"] + h2 @ p["mlp_w2"])                 # (N, C)

    # Fused (out * ca) + channel-wise mean/max — no xca materialization in HBM.
    tl2 = _pick_l_tile(L, C, 2)
    s_avg, s_max = _ca_pool_call(N, L, C, tl2)(out_l, ca.reshape(N, 1, C))
    s = jnp.concatenate([s_avg, s_max], axis=-1).reshape(N, H, W, 2)

    # Tiny 7x7 2->1 spatial conv: plain XLA (per perf review).
    sa = jax.nn.sigmoid(lax.conv_general_dilated(
        s, p["spatial_w"], (1, 1), ((3, 3), (3, 3)),
        dimension_numbers=("NHWC", "HWIO", "NHWC")))                         # (N,H,W,1)
    return ca, sa


# ------------------------------ AttentionBlock forward ----------------------------

def attention_block_forward(params, x, *, stride):
    # conv1's consumer is conv2 (bf16 MXU operand) -> emit bf16 directly.
    out1 = conv_bn(x, params["conv1_w"], params["bn1"], stride=stride, padding=1,
                   relu=True, out_dtype=jnp.bfloat16)
    out = conv_bn(out1, params["conv2_w"], params["bn2"], stride=1, padding=1,
                  relu=False, out_dtype=jnp.float32)
    ca, sa = cbam_attention(out, params["cbam"])
    if "down_w" in params:
        identity = conv_bn(x, params["down_w"], params["down_bn"],
                           stride=stride, padding=0, relu=False,
                           out_dtype=jnp.float32)
    else:
        identity = x
    N, Ho, Wo, C = out.shape
    L = Ho * Wo
    tl = _pick_l_tile(L, C, 5)   # 5 f32 streams per block
    y = _cbam_residual_call(N, L, C, tl)(
        out.reshape(N, L, C),
        ca.reshape(N, 1, C),
        sa.reshape(N, L, 1),
        identity.reshape(N, L, C).astype(jnp.float32))
    return y.reshape(N, Ho, Wo, C)


# ----------------------------- pure-XLA reference (check) -------------------------

def _conv_bn_reference(x, w, bn, stride, padding, relu, eps=1e-5):
    y = lax.conv_general_dilated(
        x.astype(jnp.bfloat16), w, (stride, stride),
        ((padding, padding), (padding, padding)),
        dimension_numbers=("NHWC", "HWIO", "NHWC"),
        preferred_element_type=jnp.float32)
    gamma, beta, mean, var = bn
    inv = lax.rsqrt(var + eps)
    y = y * (gamma * inv) + (beta - mean * gamma * inv)
    return jnp.maximum(y, 0.0) if relu else y


def _cbam_attention_reference(out, p):
    avg = jnp.mean(out, axis=(1, 2))
    mx = jnp.max(out, axis=(1, 2))
    h1 = jnp.maximum(avg @ p["mlp_w1"], 0.0)
    h2 = jnp.maximum(mx @ p["mlp_w1"], 0.0)
    ca = jax.nn.sigmoid(h1 @ p["mlp_w2"] + h2 @ p["mlp_w2"])
    xca = out * ca[:, None, None, :]
    s = jnp.concatenate([jnp.mean(xca, axis=-1, keepdims=True),
                         jnp.max(xca, axis=-1, keepdims=True)], axis=-1)
    sa = jax.nn.sigmoid(lax.conv_general_dilated(
        s, p["spatial_w"], (1, 1), ((3, 3), (3, 3)),
        dimension_numbers=("NHWC", "HWIO", "NHWC")))
    return ca, sa


def attention_block_reference(params, x, *, stride):
    out = _conv_bn_reference(x, params["conv1_w"], params["bn1"], stride, 1, True)
    out = _conv_bn_reference(out, params["conv2_w"], params["bn2"], 1, 1, False)
    ca, sa = _cbam_attention_reference(out, params["cbam"])
    if "down_w" in params:
        identity = _conv_bn_reference(x, params["down_w"], params["down_bn"],
                                      stride, 0, False)
    else:
        identity = x
    return jnp.maximum(out * ca[:, None, None, :] * sa + identity, 0.0)


# ----------------------------------- init -----------------------------------------

def init_attention_block_params(key, inplanes, planes, stride=1, reduction=16):
    ks = jax.random.split(key, 6)

    def conv_w(k, kh, kw, cin, cout):
        std = math.sqrt(2.0 / (kh * kw * cin))
        w = jax.random.normal(k, (kh, kw, cin, cout), jnp.float32) * std
        return w.astype(jnp.bfloat16)        # MXU operand stored bf16 (f32 accumulate)

    def bn_params(c):
        # PyTorch BatchNorm2d inference defaults: gamma=1, beta=0, mean=0, var=1.
        return (jnp.ones((c,), jnp.float32), jnp.zeros((c,), jnp.float32),
                jnp.zeros((c,), jnp.float32), jnp.ones((c,), jnp.float32))

    p = dict(
        conv1_w=conv_w(ks[0], 3, 3, inplanes, planes), bn1=bn_params(planes),
        conv2_w=conv_w(ks[1], 3, 3, planes, planes), bn2=bn_params(planes),
        cbam=dict(
            mlp_w1=jax.random.normal(ks[2], (planes, planes // reduction),
                                     jnp.float32) * math.sqrt(2.0 / planes),
            mlp_w2=jax.random.normal(ks[3], (planes // reduction, planes),
                                     jnp.float32) * math.sqrt(2.0 / (planes // reduction)),
            spatial_w=jax.random.normal(ks[4], (7, 7, 2, 1),
                                        jnp.float32) * math.sqrt(2.0 / (7 * 7 * 2)),
        ),
    )
    if stride != 1 or inplanes != planes:
        p["down_w"] = conv_w(ks[5], 1, 1, inplanes, planes)
        p["down_bn"] = bn_params(planes)
    return p


# ----------------------------------- main ------------------------------------------

if __name__ == "__main__":
    key = jax.random.PRNGKey(0)
    k_x, k_p = jax.random.split(key)

    # PyTorch reference input would be NCHW (2, 64, 16, 16); NHWC here.
    # AttentionBlock(inplanes=64, planes=128, stride=2, downsample=conv1x1+BN).
    x = jax.random.normal(k_x, (2, 16, 16, 64), jnp.float32)
    params = init_attention_block_params(k_p, inplanes=64, planes=128, stride=2)

    fwd = jax.jit(functools.partial(attention_block_forward, stride=2))
    y = fwd(params, x)
    jax.block_until_ready(y)
    assert y.shape == (2, 8, 8, 128), y.shape

    # Numerical sanity check against a pure-XLA reference with matching bf16 numerics.
    ref = attention_block_reference(params, x, stride=2)
    err = float(jnp.max(jnp.abs(y - ref)))
    assert err < 5e-2, f"mismatch vs reference: max abs err = {err}"

    print("KERNEL_OK")
</pallas_src>

<mosaic_0001>
module attributes {stable_mosaic.version = 11 : i64} {
  func.func @_conv_bn_kernel(%arg0: i32, %arg1: i32, %arg2: memref<64x576xbf16, #tpu.memory_space<vmem>>, %arg3: memref<576x128xbf16, #tpu.memory_space<vmem>>, %arg4: memref<1x128xf32, #tpu.memory_space<vmem>>, %arg5: memref<1x128xf32, #tpu.memory_space<vmem>>, %arg6: memref<64x128xbf16, #tpu.memory_space<vmem>>) attributes {dimension_semantics = [#tpu.dimension_semantics<parallel>, #tpu.dimension_semantics<parallel>], iteration_bounds = array<i64: 2, 1>, scalar_prefetch = 0 : i64, scratch_operands = 0 : i64, tpu.core_type = #tpu.core_type<tc>, window_params = [{transform_indices = @transform_0, window_bounds = array<i64: 64, 576>}, {transform_indices = @transform_1, window_bounds = array<i64: 576, 128>}, {transform_indices = @transform_2, window_bounds = array<i64: 1, 128>}, {transform_indices = @transform_3, window_bounds = array<i64: 1, 128>}, {transform_indices = @transform_4, window_bounds = array<i64: 64, 128>}]} {
    %c0 = arith.constant 0 : index
    %c0_0 = arith.constant 0 : index
    %0 = vector.load %arg2[%c0, %c0_0] : memref<64x576xbf16, #tpu.memory_space<vmem>>, vector<64x576xbf16>
    %c0_1 = arith.constant 0 : index
    %c0_2 = arith.constant 0 : index
    %1 = vector.load %arg3[%c0_1, %c0_2] : memref<576x128xbf16, #tpu.memory_space<vmem>>, vector<576x128xbf16>
    %cst = arith.constant dense<0.000000e+00> : vector<64x128xf32>
    %2 = tpu.matmul %0, %1, %cst {dimension_numbers = #tpu.dot_dimension_numbers<[1], [0], [0], [1], [0, 0, 1, 1], [], []>} : vector<64x576xbf16>, vector<576x128xbf16>, vector<64x128xf32> -> vector<64x128xf32>
    %c0_3 = arith.constant 0 : index
    %c0_4 = arith.constant 0 : index
    %3 = vector.load %arg4[%c0_3, %c0_4] : memref<1x128xf32, #tpu.memory_space<vmem>>, vector<1x128xf32>
    %4 = vector.broadcast %3 : vector<1x128xf32> to vector<64x128xf32>
    %5 = arith.mulf %2, %4 : vector<64x128xf32>
    %c0_5 = arith.constant 0 : index
    %c0_6 = arith.constant 0 : index
    %6 = vector.load %arg5[%c0_5, %c0_6] : memref<1x128xf32, #tpu.memory_space<vmem>>, vector<1x128xf32>
    %7 = vector.broadcast %6 : vector<1x128xf32> to vector<64x128xf32>
    %8 = arith.addf %5, %7 : vector<64x128xf32>
    %cst_7 = arith.constant 0.000000e+00 : f32
    %9 = vector.broadcast %cst_7 : f32 to vector<64x128xf32>
    %10 = arith.maximumf %8, %9 : vector<64x128xf32>
    %11 = arith.truncf %10 : vector<64x128xf32> to vector<64x128xbf16>
    %c0_8 = arith.constant 0 : index
    %c0_9 = arith.constant 0 : index
    %12 = vector.load %arg6[%c0_8, %c0_9] : memref<64x128xbf16, #tpu.memory_space<vmem>>, vector<64x128xbf16>
    tpu.vector_store %arg6[%c0_8, %c0_9], %11 {strides = array<i32>} : memref<64x128xbf16, #tpu.memory_space<vmem>>, vector<64x128xbf16>,
    return
  }
  func.func @transform_0(%arg0: i32, %arg1: i32) -> (i32, i32) {
    %c0_i32 = arith.constant 0 : i32
    %c0_i32_0 = arith.constant 0 : i32
    return %arg0, %c0_i32 : i32, i32
  }
  func.func @transform_1(%arg0: i32, %arg1: i32) -> (i32, i32) {
    %c0_i32 = arith.constant 0 : i32
    %c0_i32_0 = arith.constant 0 : i32
    return %c0_i32, %arg1 : i32, i32
  }
  func.func @transform_2(%arg0: i32, %arg1: i32) -> (i32, i32) {
    %c0_i32 = arith.constant 0 : i32
    %c0_i32_0 = arith.constant 0 : i32
    return %c0_i32, %arg1 : i32, i32
  }
  func.func @transform_3(%arg0: i32, %arg1: i32) -> (i32, i32) {
    %c0_i32 = arith.constant 0 : i32
    %c0_i32_0 = arith.constant 0 : i32
    return %c0_i32, %arg1 : i32, i32
  }
  func.func @transform_4(%arg0: i32, %arg1: i32) -> (i32, i32) {
    %c0_i32 = arith.constant 0 : i32
    return %arg0, %arg1 : i32, i32
  }
}

</mosaic_0001>

<llo_original>
// kernel: tpu_custom_call.1
$region0: #{tpu_custom_call.1}
  #allocation0 [shape = 'u32[]', space=smem, size = 0x4, offset = 0x4, fixed_abs, tag = 'smem constant byte address 0x4 - core index']
  #allocation1 [shape = 'u32[144,128]{1,0:T(1,128)}', space=vmem, size = 0x12000, scoped, tag = 'internal scratch']
  %s0 = inlined_call_operand.vmem [shape: bf16[128,576], index: 0, kind: input, shape index: {}]
  %s1 = inlined_call_operand.vmem [shape: bf16[576,128], index: 1, kind: input, shape index: {}]
  %s2 = inlined_call_operand.vmem [shape: f32[1,128], index: 2, kind: input, shape index: {}]
  %s3 = inlined_call_operand.vmem [shape: f32[1,128], index: 3, kind: input, shape index: {}]
  %s4 = inlined_call_operand.hbm [shape: bf16[128,128], index: 4, kind: output, shape index: {}]
  %s5 = sld [smem:[#allocation0]]
  $region49: #{tpu_custom_call.1} parent=0
    _
  %s7 = ssub.s32 1, %s5
  %s8 = scalar_select 0, %s7, %s5
  $region1: #{tpu_custom_call.1} parent=0
    #allocation2 [shape = 'u8[32768]{0}', space=vmem, size = 0x8000, scoped, tag = 'output window, operand 0']
    #allocation3 [shape = 's32[2]{0}', space=sflag, size = 0x8, scoped, tag = 'scoped memory for tpu_custom_call.1']
    %9 = vsyncpa [#allocation3], 0
    %s10 = scalar_lea.sflag [#allocation3], 1
    %11 = vsyncpa %s10, 0
    loop: start=0, step=1, limit=4
    $region2: #{tpu_custom_call.1} parent=1 // loop_pre_header
      _
    $region3: #{tpu_custom_call.1} parent=1 // loop_header
      %s13 = sphi 0, %s17
      %p14 = scmp.ge.s32.totalorder %s13, 4
      %s20 = sphi 0, %s32
      %s21 = sphi 0, %s28
      %s22 = sphi 0, %s20
      %s23 = sphi 0, %s21
      %s24 = sphi 0, %s22
      %s25 = sphi 0, %s23
      %s35 = sphi 0, %s37
      %s38 = sphi 0, %s35
      %s39 = sphi 0, %s38
      %s55 = sphi 0, %s39
      %s61 = sphi 0, %s63
      %s64 = sphi 0, %s61
      %s65 = sphi 0, %s64
      %s81 = sphi 0, %s65
      %s87 = sphi 0, %s89
      %s90 = sphi 0, %s87
      %s91 = sphi 0, %s90
      %s107 = sphi 0, %s91
      %s113 = sphi 0, %s115
      %s116 = sphi 0, %s113
      %s117 = sphi 0, %s116
      %s133 = sphi 0, %s117
      %s141 = sphi 0, %s143
      %s144 = sphi 0, %s141
      %s145 = sphi 0, %s144
      %s161 = sphi 0, %s145
    $region4: #{tpu_custom_call.1} parent=1 // loop_header_branch
      %16 = sbr.rel (%p14) target = $region8
    $region5: #{tpu_custom_call.1} parent=1 // loop_body
      %s18 = ssub.s32 %s13, 1
      %s19 = ssub.s32 %s13, 2
      %s26 = sadd.s32 1, %s21
      %p27 = scmp.ge.s32.totalorder %s26, 1
      %s28 = scalar_select %p27, 0, %s26
      %s29 = sadd.s32 1, %s20
      %s30 = scalar_select %p27, %s29, %s20
      %p31 = scmp.ge.s32.totalorder %s30, 2
      %s32 = scalar_select %p31, 0, %s30
      %s33 = ssub.s32 %s20, %s32
      %p34 = scmp.eq.s32.totalorder %s33, 0
      %s36 = sadd.s32 %s35, 1
      %s37 = scalar_select %p34, %s35, %s36
      %p40 = pneg %p34
      %p41 = scmp.eq.s32.totalorder %s13, 1
      %p42 = por %p40, %p41
      %p43 = scmp.ne.s32.totalorder %s35, %s38
      %p44 = scmp.eq.s32.totalorder %s13, 0
      %p45 = por %p43, %p44
      %p46 = scmp.ne.s32.totalorder %s35, %s38
      %p47 = scmp.eq.s32.totalorder %s18, 1
      %p48 = por %p46, %p47
      %p49 = scmp.ne.s32.totalorder %s38, %s39
      %p50 = scmp.eq.s32.totalorder %s18, 0
      %p51 = por %p49, %p50
      %p52 = scmp.ne.s32.totalorder %s38, %s39
      %p53 = scmp.eq.s32.totalorder %s19, 1
      %p54 = por %p52, %p53
      %p56 = scmp.ne.s32.totalorder %s39, %s55
      %p57 = scmp.eq.s32.totalorder %s19, 0
      %p58 = por %p56, %p57
      %s59 = ssub.s32 %s21, %s28
      %p60 = scmp.eq.s32.totalorder %s59, 0
      %s62 = sadd.s32 %s61, 1
      %s63 = scalar_select %p60, %s61, %s62
      %p66 = pneg %p60
      %p67 = scmp.eq.s32.totalorder %s13, 1
      %p68 = por %p66, %p67
      %p69 = scmp.ne.s32.totalorder %s61, %s64
      %p70 = scmp.eq.s32.totalorder %s13, 0
      %p71 = por %p69, %p70
      %p72 = scmp.ne.s32.totalorder %s61, %s64
      %p73 = scmp.eq.s32.totalorder %s18, 1
      %p74 = por %p72, %p73
      %p75 = scmp.ne.s32.totalorder %s64, %s65
      %p76 = scmp.eq.s32.totalorder %s18, 0
      %p77 = por %p75, %p76
      %p78 = scmp.ne.s32.totalorder %s64, %s65
      %p79 = scmp.eq.s32.totalorder %s19, 1
      %p80 = por %p78, %p79
      %p82 = scmp.ne.s32.totalorder %s65, %s81
      %p83 = scmp.eq.s32.totalorder %s19, 0
      %p84 = por %p82, %p83
      %s85 = ssub.s32 %s21, %s28
      %p86 = scmp.eq.s32.totalorder %s85, 0
      %s88 = sadd.s32 %s87, 1
      %s89 = scalar_select %p86, %s87, %s88
      %p92 = pneg %p86
      %p93 = scmp.eq.s32.totalorder %s13, 1
      %p94 = por %p92, %p93
      %p95 = scmp.ne.s32.totalorder %s87, %s90
      %p96 = scmp.eq.s32.totalorder %s13, 0
      %p97 = por %p95, %p96
      %p98 = scmp.ne.s32.totalorder %s87, %s90
      %p99 = scmp.eq.s32.totalorder %s18, 1
      %p100 = por %p98, %p99
      %p101 = scmp.ne.s32.totalorder %s90, %s91
      %p102 = scmp.eq.s32.totalorder %s18, 0
      %p103 = por %p101, %p102
      %p104 = scmp.ne.s32.totalorder %s90, %s91
      %p105 = scmp.eq.s32.totalorder %s19, 1
      %p106 = por %p104, %p105
      %p108 = scmp.ne.s32.totalorder %s91, %s107
      %p109 = scmp.eq.s32.totalorder %s19, 0
      %p110 = por %p108, %p109
      %s111 = ssub.s32 %s21, %s28
      %p112 = scmp.eq.s32.totalorder %s111, 0
      %s114 = sadd.s32 %s113, 1
      %s115 = scalar_select %p112, %s113, %s114
      %p118 = pneg %p112
      %p119 = scmp.eq.s32.totalorder %s13, 1
      %p120 = por %p118, %p119
      %p121 = scmp.ne.s32.totalorder %s113, %s116
      %p122 = scmp.eq.s32.totalorder %s13, 0
      %p123 = por %p121, %p122
      %p124 = scmp.ne.s32.totalorder %s113, %s116
      %p125 = scmp.eq.s32.totalorder %s18, 1
      %p126 = por %p124, %p125
      %p127 = scmp.ne.s32.totalorder %s116, %s117
      %p128 = scmp.eq.s32.totalorder %s18, 0
      %p129 = por %p127, %p128
      %p130 = scmp.ne.s32.totalorder %s116, %s117
      %p131 = scmp.eq.s32.totalorder %s19, 1
      %p132 = por %p130, %p131
      %p134 = scmp.ne.s32.totalorder %s117, %s133
      %p135 = scmp.eq.s32.totalorder %s19, 0
      %p136 = por %p134, %p135
      %s137 = ssub.s32 %s20, %s32
      %s138 = ssub.s32 %s21, %s28
      %s139 = sor.u32 %s137, %s138
      %p140 = scmp.eq.s32.totalorder %s139, 0
      %s142 = sadd.s32 %s141, 1
      %s143 = scalar_select %p140, %s141, %s142
      %p146 = pneg %p140
      %p147 = scmp.eq.s32.totalorder %s13, 1
      %p148 = por %p146, %p147
      %p149 = scmp.ne.s32.totalorder %s141, %s144
      %p150 = scmp.eq.s32.totalorder %s13, 0
      %p151 = por %p149, %p150
      %p152 = scmp.ne.s32.totalorder %s141, %s144
      %p153 = scmp.eq.s32.totalorder %s18, 1
      %p154 = por %p152, %p153
      %p155 = scmp.ne.s32.totalorder %s144, %s145
      %p156 = scmp.eq.s32.totalorder %s18, 0
      %p157 = por %p155, %p156
      %p158 = scmp.ne.s32.totalorder %s144, %s145
      %p159 = scmp.eq.s32.totalorder %s19, 1
      %p160 = por %p158, %p159
      %p162 = scmp.ne.s32.totalorder %s145, %s161
      %p163 = scmp.eq.s32.totalorder %s19, 0
      %p164 = por %p162, %p163
      %p165 = scmp.le.s32.totalorder 1, %s13
      %p166 = scmp.lt.s32.totalorder %s13, 3
      %p167 = pnand %p165, %p166
      %p168 = pneg %p167
      // Predicated region
      $region9: #{tpu_custom_call.1} parent=5 // pred_check
        _
      $region10: #{tpu_custom_call.1} parent=5 // pred_check_branch
        %170 = sbr.rel (%p167) target = $region12
      $region11: #{tpu_custom_call.1} parent=5 // pred_region
        %s171 = ssub.s32 %s13, 1
        // Predicated region
        $region13: #{tpu_custom_call.1} parent=11 // pred_check
          %p172 = pneg %p77
        $region14: #{tpu_custom_call.1} parent=11 // pred_check_branch
          %174 = sbr.rel (%p172) target = $region16
        $region15: #{tpu_custom_call.1} parent=11 // pred_region
          %p175 = scmp.lt.s32.totalorder %s23, 0
          %s176 = scalar_select %p175, %s23, 0
          %s177 = smul.addr %s176, 4
          %s178 = scalar_lea.vmem %s1, %s177
        $region16: #{tpu_custom_call.1} parent=11 // pred_fallthru
          _
        // Predicated region
        $region17: #{tpu_custom_call.1} parent=11 // pred_check
          %p179 = pneg %p103
        $region18: #{tpu_custom_call.1} parent=11 // pred_check_branch
          %181 = sbr.rel (%p179) target = $region20
        $region19: #{tpu_custom_call.1} parent=11 // pred_region
          %p182 = scmp.lt.s32.totalorder %s23, 0
          %s183 = scalar_select %p182, %s23, 0
          %s184 = scalar_lea.vmem %s2, %s183
        $region20: #{tpu_custom_call.1} parent=11 // pred_fallthru
          _
        // Predicated region
        $region21: #{tpu_custom_call.1} parent=11 // pred_check
          %p185 = pneg %p129
        $region22: #{tpu_custom_call.1} parent=11 // pred_check_branch
          %187 = sbr.rel (%p185) target = $region24
        $region23: #{tpu_custom_call.1} parent=11 // pred_region
          %p188 = scmp.lt.s32.totalorder %s23, 0
          %s189 = scalar_select %p188, %s23, 0
          %s190 = scalar_lea.vmem %s3, %s189
        $region24: #{tpu_custom_call.1} parent=11 // pred_fallthru
          _
      $region12: #{tpu_custom_call.1} parent=5 // pred_fallthru
        _
      %p191 = scmp.lt.s32.totalorder %s13, 2
      // Predicated region
      $region25: #{tpu_custom_call.1} parent=5 // pred_check
        %p192 = pneg %p191
      $region26: #{tpu_custom_call.1} parent=5 // pred_check_branch
        %194 = sbr.rel (%p192) target = $region28
      $region27: #{tpu_custom_call.1} parent=5 // pred_region
        // Predicated region
        $region29: #{tpu_custom_call.1} parent=27 // pred_check
          %p195 = pneg %p45
        $region30: #{tpu_custom_call.1} parent=27 // pred_check_branch
          %197 = sbr.rel (%p195) target = $region32
        $region31: #{tpu_custom_call.1} parent=27 // pred_region
          %s198 = smul.u32 8, %s20
          %p199 = scmp.lt.s32.totalorder %s198, 15
          %s200 = scalar_select %p199, %s198, 15
          %s201 = smul.addr %s200, 5
          %s202 = smul.addr %s201, 4
          %s203 = scalar_lea.vmem %s0, %s202
          %s204 = smul.u32 8, %s20
        $region32: #{tpu_custom_call.1} parent=27 // pred_fallthru
          _
      $region28: #{tpu_custom_call.1} parent=5 // pred_fallthru
        _
      %p205 = scmp.le.s32.totalorder 1, %s13
      %p206 = scmp.lt.s32.totalorder %s13, 3
      %p207 = pnand %p205, %p206
      %p208 = pneg %p207
      // Predicated region
      $region33: #{tpu_custom_call.1} parent=5 // pred_check
        _
      $region34: #{tpu_custom_call.1} parent=5 // pred_check_branch
        %210 = sbr.rel (%p207) target = $region36
      $region35: #{tpu_custom_call.1} parent=5 // pred_region
        %s211 = ssub.s32 %s13, 1
        %s212 = smul.u32 8, %s22
        %p213 = scmp.lt.s32.totalorder %s212, 15
        %s214 = scalar_select %p213, %s212, 15
        %s215 = smul.addr %s214, 5
        %s216 = smul.addr %s215, 4
        %s217 = scalar_lea.vmem %s0, %s216
        %p218 = pneg %p51
        %p219 = pneg %p48
        %p220 = scmp.lt.s32.totalorder %s23, 0
        %s221 = scalar_select %p220, %s23, 0
        %s222 = smul.addr %s221, 4
        %s223 = scalar_lea.vmem %s1, %s222
        %p224 = pneg %p77
        %p225 = pneg %p74
        %p226 = scmp.lt.s32.totalorder %s23, 0
        %s227 = scalar_select %p226, %s23, 0
        %s228 = scalar_lea.vmem %s2, %s227
        %p229 = pneg %p103
        %p230 = pneg %p100
        %p231 = scmp.lt.s32.totalorder %s23, 0
        %s232 = scalar_select %p231, %s23, 0
        %s233 = scalar_lea.vmem %s3, %s232
        %p234 = pneg %p129
        %p235 = pneg %p126
        %p236 = pneg %p157
        %p237 = pneg %p154
        %s238 = sand.u32 %s144, 1
        %s239 = scalar_lea.sflag [#allocation3], %s238
        %s240 = sand.u32 %s144, 1
        %s241 = smul.addr %s240, 32
        %s242 = scalar_lea.vmem [#allocation2], %s241
        %s243 = smul.u32 8, %s22
        %p244 = scmp.lt.s32.totalorder %s243, 15
        %s245 = scalar_select %p244, %s243, 15
        %s246 = smul.addr %s245, 5
        %s247 = smul.addr %s246, 4
        %s248 = scalar_lea.vmem %s0, %s247
        %s249 = smul.u32 8, %s22
        %p250 = scmp.lt.s32.totalorder %s23, 0
        %s251 = scalar_select %p250, %s23, 0
        %s252 = smul.addr %s251, 4
        %s253 = scalar_lea.vmem %s1, %s252
        %p254 = scmp.lt.s32.totalorder %s23, 0
        %s255 = scalar_select %p254, %s23, 0
        %s256 = scalar_lea.vmem %s2, %s255
        %p257 = scmp.lt.s32.totalorder %s23, 0
        %s258 = scalar_select %p257, %s23, 0
        %s259 = scalar_lea.vmem %s3, %s258
        %s260 = smul.u32 8, %s22
        %v262 = vld [vmem:[%s248] sm:$0xff]
        %v263 = vld [vmem:[%s248 + $0x8] sm:$0xff]
        %v264 = vld [vmem:[%s248 + $0x10] sm:$0xf]
        %v265 = vld [vmem:[%s248 + $0x14] sm:$0xff]
        %v266 = vld [vmem:[%s248 + $0x1c] sm:$0xff]
        %v267 = vld [vmem:[%s248 + $0x24] sm:$0xf]
        %v268 = vld [vmem:[%s248 + $0x28] sm:$0xff]
        %v269 = vld [vmem:[%s248 + $0x30] sm:$0xff]
        %v270 = vld [vmem:[%s248 + $0x38] sm:$0xf]
        %v271 = vld [vmem:[%s248 + $0x3c] sm:$0xff]
        %v272 = vld [vmem:[%s248 + $0x44] sm:$0xff]
        %v273 = vld [vmem:[%s248 + $0x4c] sm:$0xf]
        %v274 = vld [vmem:[%s248 + $0x50] sm:$0xff]
        %v275 = vld [vmem:[%s248 + $0x58] sm:$0xff]
        %v276 = vld [vmem:[%s248 + $0x60] sm:$0xf]
        %v277 = vld [vmem:[%s248 + $0x64] sm:$0xff]
        %v278 = vld [vmem:[%s248 + $0x6c] sm:$0xff]
        %v279 = vld [vmem:[%s248 + $0x74] sm:$0xf]
        %v280 = vld [vmem:[%s248 + $0x78] sm:$0xff]
        %v281 = vld [vmem:[%s248 + $0x80] sm:$0xff]
        %v282 = vld [vmem:[%s248 + $0x88] sm:$0xf]
        %v283 = vld [vmem:[%s248 + $0x8c] sm:$0xff]
        %v284 = vld [vmem:[%s248 + $0x94] sm:$0xff]
        %v285 = vld [vmem:[%s248 + $0x9c] sm:$0xf]
        %v286 = vld [vmem:[%s253] sm:$0xf]
        %v287 = vld [vmem:[%s253 + $0x4] sm:$0xf]
        %v288 = vld [vmem:[%s253 + $0x8] sm:$0xf]
        %v289 = vld [vmem:[%s253 + $0xc] sm:$0xf]
        %v290 = vld [vmem:[%s253 + $0x10] sm:$0xf]
        %v291 = vld [vmem:[%s253 + $0x14] sm:$0xf]
        %v292 = vld [vmem:[%s253 + $0x18] sm:$0xf]
        %v293 = vld [vmem:[%s253 + $0x1c] sm:$0xf]
        %v294 = vld [vmem:[%s253 + $0x20] sm:$0xf]
        %v295 = vld [vmem:[%s253 + $0x24] sm:$0xf]
        %v296 = vld [vmem:[%s253 + $0x28] sm:$0xf]
        %v297 = vld [vmem:[%s253 + $0x2c] sm:$0xf]
        %v298 = vld [vmem:[%s253 + $0x30] sm:$0xf]
        %v299 = vld [vmem:[%s253 + $0x34] sm:$0xf]
        %v300 = vld [vmem:[%s253 + $0x38] sm:$0xf]
        %v301 = vld [vmem:[%s253 + $0x3c] sm:$0xf]
        %v302 = vld [vmem:[%s253 + $0x40] sm:$0xf]
        %v303 = vld [vmem:[%s253 + $0x44] sm:$0xf]
        %v304 = vld [vmem:[%s253 + $0x48] sm:$0xf]
        %v305 = vld [vmem:[%s253 + $0x4c] sm:$0xf]
        %v306 = vld [vmem:[%s253 + $0x50] sm:$0xf]
        %v307 = vld [vmem:[%s253 + $0x54] sm:$0xf]
        %v308 = vld [vmem:[%s253 + $0x58] sm:$0xf]
        %v309 = vld [vmem:[%s253 + $0x5c] sm:$0xf]
        %v310 = vld [vmem:[%s253 + $0x60] sm:$0xf]
        %v311 = vld [vmem:[%s253 + $0x64] sm:$0xf]
        %v312 = vld [vmem:[%s253 + $0x68] sm:$0xf]
        %v313 = vld [vmem:[%s253 + $0x6c] sm:$0xf]
        %v314 = vld [vmem:[%s253 + $0x70] sm:$0xf]
        %v315 = vld [vmem:[%s253 + $0x74] sm:$0xf]
        %v316 = vld [vmem:[%s253 + $0x78] sm:$0xf]
        %v317 = vld [vmem:[%s253 + $0x7c] sm:$0xf]
        %v318 = vld [vmem:[%s253 + $0x80] sm:$0xf]
        %v319 = vld [vmem:[%s253 + $0x84] sm:$0xf]
        %v320 = vld [vmem:[%s253 + $0x88] sm:$0xf]
        %v321 = vld [vmem:[%s253 + $0x8c] sm:$0xf]
        %v322 = vld [vmem:[%s253 + $0x90] sm:$0xf]
        %v323 = vld [vmem:[%s253 + $0x94] sm:$0xf]
        %v324 = vld [vmem:[%s253 + $0x98] sm:$0xf]
        %v325 = vld [vmem:[%s253 + $0x9c] sm:$0xf]
        %v326 = vld [vmem:[%s253 + $0xa0] sm:$0xf]
        %v327 = vld [vmem:[%s253 + $0xa4] sm:$0xf]
        %v328 = vld [vmem:[%s253 + $0xa8] sm:$0xf]
        %v329 = vld [vmem:[%s253 + $0xac] sm:$0xf]
        %v330 = vld [vmem:[%s253 + $0xb0] sm:$0xf]
        %v331 = vld [vmem:[%s253 + $0xb4] sm:$0xf]
        %v332 = vld [vmem:[%s253 + $0xb8] sm:$0xf]
        %v333 = vld [vmem:[%s253 + $0xbc] sm:$0xf]
        %v334 = vld [vmem:[%s253 + $0xc0] sm:$0xf]
        %v335 = vld [vmem:[%s253 + $0xc4] sm:$0xf]
        %v336 = vld [vmem:[%s253 + $0xc8] sm:$0xf]
        %v337 = vld [vmem:[%s253 + $0xcc] sm:$0xf]
        %v338 = vld [vmem:[%s253 + $0xd0] sm:$0xf]
        %v339 = vld [vmem:[%s253 + $0xd4] sm:$0xf]
        %v340 = vld [vmem:[%s253 + $0xd8] sm:$0xf]
        %v341 = vld [vmem:[%s253 + $0xdc] sm:$0xf]
        %v342 = vld [vmem:[%s253 + $0xe0] sm:$0xf]
        %v343 = vld [vmem:[%s253 + $0xe4] sm:$0xf]
        %v344 = vld [vmem:[%s253 + $0xe8] sm:$0xf]
        %v345 = vld [vmem:[%s253 + $0xec] sm:$0xf]
        %v346 = vld [vmem:[%s253 + $0xf0] sm:$0xf]
        %v347 = vld [vmem:[%s253 + $0xf4] sm:$0xf]
        %v348 = vld [vmem:[%s253 + $0xf8] sm:$0xf]
        %v349 = vld [vmem:[%s253 + $0xfc] sm:$0xf]
        %v350 = vld [vmem:[%s253 + $0x100] sm:$0xf]
        %v351 = vld [vmem:[%s253 + $0x104] sm:$0xf]
        %v352 = vld [vmem:[%s253 + $0x108] sm:$0xf]
        %v353 = vld [vmem:[%s253 + $0x10c] sm:$0xf]
        %v354 = vld [vmem:[%s253 + $0x110] sm:$0xf]
        %v355 = vld [vmem:[%s253 + $0x114] sm:$0xf]
        %v356 = vld [vmem:[%s253 + $0x118] sm:$0xf]
        %v357 = vld [vmem:[%s253 + $0x11c] sm:$0xf]
        %v382 = vunpack.c.l.b16 %v262
        %v383 = vunpack.c.h.b16 %v262
        %v384 = vunpack.c.l.b16 %v263
        %v385 = vunpack.c.h.b16 %v263
        %v386 = vunpack.c.l.b16 %v264
        %v387 = vunpack.c.l.b16 %v265
        %v388 = vunpack.c.h.b16 %v265
        %v389 = vunpack.c.l.b16 %v266
        %v390 = vunpack.c.h.b16 %v266
        %v391 = vunpack.c.l.b16 %v267
        %v392 = vunpack.c.l.b16 %v268
        %v393 = vunpack.c.h.b16 %v268
        %v394 = vunpack.c.l.b16 %v269
        %v395 = vunpack.c.h.b16 %v269
        %v396 = vunpack.c.l.b16 %v270
        %v397 = vunpack.c.l.b16 %v271
        %v398 = vunpack.c.h.b16 %v271
        %v399 = vunpack.c.l.b16 %v272
        %v400 = vunpack.c.h.b16 %v272
        %v401 = vunpack.c.l.b16 %v273
        %v402 = vunpack.c.l.b16 %v274
        %v403 = vunpack.c.h.b16 %v274
        %v404 = vunpack.c.l.b16 %v275
        %v405 = vunpack.c.h.b16 %v275
        %v406 = vunpack.c.l.b16 %v276
        %v407 = vunpack.c.l.b16 %v277
        %v408 = vunpack.c.h.b16 %v277
        %v409 = vunpack.c.l.b16 %v278
        %v410 = vunpack.c.h.b16 %v278
        %v411 = vunpack.c.l.b16 %v279
        %v412 = vunpack.c.l.b16 %v280
        %v413 = vunpack.c.h.b16 %v280
        %v414 = vunpack.c.l.b16 %v281
        %v415 = vunpack.c.h.b16 %v281
        %v416 = vunpack.c.l.b16 %v282
        %v417 = vunpack.c.l.b16 %v283
        %v418 = vunpack.c.h.b16 %v283
        %v419 = vunpack.c.l.b16 %v284
        %v420 = vunpack.c.h.b16 %v284
        %v421 = vunpack.c.l.b16 %v285
        %v422 = vpack.c.b16 %v387, %v382
        %v423 = vpack.c.b16 %v388, %v383
        %v424 = vpack.c.b16 %v389, %v384
        %v425 = vpack.c.b16 %v390, %v385
        %v426 = vpack.c.b16 %v391, %v386
        %v427 = vpack.c.b16 %v397, %v392
        %v428 = vpack.c.b16 %v398, %v393
        %v429 = vpack.c.b16 %v399, %v394
        %v430 = vpack.c.b16 %v400, %v395
        %v431 = vpack.c.b16 %v401, %v396
        %v432 = vpack.c.b16 %v407, %v402
        %v433 = vpack.c.b16 %v408, %v403
        %v434 = vpack.c.b16 %v409, %v404
        %v435 = vpack.c.b16 %v410, %v405
        %v436 = vpack.c.b16 %v411, %v406
        %v437 = vpack.c.b16 %v417, %v412
        %v438 = vpack.c.b16 %v418, %v413
        %v439 = vpack.c.b16 %v419, %v414
        %v440 = vpack.c.b16 %v420, %v415
        %v441 = vpack.c.b16 %v421, %v416
        %v530 = vunpack.c.l.b16 %v286
        %v531 = vunpack.c.l.b16 %v287
        %v532 = vunpack.c.l.b16 %v288
        %v533 = vunpack.c.l.b16 %v289
        %v534 = vunpack.c.l.b16 %v290
        %v535 = vunpack.c.l.b16 %v291
        %v536 = vunpack.c.l.b16 %v292
        %v537 = vunpack.c.l.b16 %v293
        %v538 = vunpack.c.l.b16 %v294
        %v539 = vunpack.c.l.b16 %v295
        %v540 = vunpack.c.l.b16 %v296
        %v541 = vunpack.c.l.b16 %v297
        %v542 = vunpack.c.l.b16 %v298
        %v543 = vunpack.c.l.b16 %v299
        %v544 = vunpack.c.l.b16 %v300
        %v545 = vunpack.c.l.b16 %v301
        %v546 = vunpack.c.l.b16 %v302
        %v547 = vunpack.c.l.b16 %v303
        %v548 = vunpack.c.l.b16 %v304
        %v549 = vunpack.c.l.b16 %v305
        %v550 = vunpack.c.l.b16 %v306
        %v551 = vunpack.c.l.b16 %v307
        %v552 = vunpack.c.l.b16 %v308
        %v553 = vunpack.c.l.b16 %v309
        %v554 = vunpack.c.l.b16 %v310
        %v555 = vunpack.c.l.b16 %v311
        %v556 = vunpack.c.l.b16 %v312
        %v557 = vunpack.c.l.b16 %v313
        %v558 = vunpack.c.l.b16 %v314
        %v559 = vunpack.c.l.b16 %v315
        %v560 = vunpack.c.l.b16 %v316
        %v561 = vunpack.c.l.b16 %v317
        %v562 = vunpack.c.l.b16 %v318
        %v563 = vunpack.c.l.b16 %v319
        %v564 = vunpack.c.l.b16 %v320
        %v565 = vunpack.c.l.b16 %v321
        %v566 = vunpack.c.l.b16 %v322
        %v567 = vunpack.c.l.b16 %v323
        %v568 = vunpack.c.l.b16 %v324
        %v569 = vunpack.c.l.b16 %v325
        %v570 = vunpack.c.l.b16 %v326
        %v571 = vunpack.c.l.b16 %v327
        %v572 = vunpack.c.l.b16 %v328
        %v573 = vunpack.c.l.b16 %v329
        %v574 = vunpack.c.l.b16 %v330
        %v575 = vunpack.c.l.b16 %v331
        %v576 = vunpack.c.l.b16 %v332
        %v577 = vunpack.c.l.b16 %v333
        %v578 = vunpack.c.l.b16 %v334
        %v579 = vunpack.c.l.b16 %v335
        %v580 = vunpack.c.l.b16 %v336
        %v581 = vunpack.c.l.b16 %v337
        %v582 = vunpack.c.l.b16 %v338
        %v583 = vunpack.c.l.b16 %v339
        %v584 = vunpack.c.l.b16 %v340
        %v585 = vunpack.c.l.b16 %v341
        %v586 = vunpack.c.l.b16 %v342
        %v587 = vunpack.c.l.b16 %v343
        %v588 = vunpack.c.l.b16 %v344
        %v589 = vunpack.c.l.b16 %v345
        %v590 = vunpack.c.l.b16 %v346
        %v591 = vunpack.c.l.b16 %v347
        %v592 = vunpack.c.l.b16 %v348
        %v593 = vunpack.c.l.b16 %v349
        %v594 = vunpack.c.l.b16 %v350
        %v595 = vunpack.c.l.b16 %v351
        %v596 = vunpack.c.l.b16 %v352
        %v597 = vunpack.c.l.b16 %v353
        %v598 = vunpack.c.l.b16 %v354
        %v599 = vunpack.c.l.b16 %v355
        %v600 = vunpack.c.l.b16 %v356
        %v601 = vunpack.c.l.b16 %v357
        %v602 = vpack.c.b16 %v531, %v530
        %v603 = vpack.c.b16 %v533, %v532
        %v604 = vpack.c.b16 %v535, %v534
        %v605 = vpack.c.b16 %v537, %v536
        %v606 = vpack.c.b16 %v539, %v538
        %v607 = vpack.c.b16 %v541, %v540
        %v608 = vpack.c.b16 %v543, %v542
        %v609 = vpack.c.b16 %v545, %v544
        %v610 = vpack.c.b16 %v547, %v546
        %v611 = vpack.c.b16 %v549, %v548
        %v612 = vpack.c.b16 %v551, %v550
        %v613 = vpack.c.b16 %v553, %v552
        %v614 = vpack.c.b16 %v555, %v554
        %v615 = vpack.c.b16 %v557, %v556
        %v616 = vpack.c.b16 %v559, %v558
        %v617 = vpack.c.b16 %v561, %v560
        %v618 = vpack.c.b16 %v563, %v562
        %v619 = vpack.c.b16 %v565, %v564
        %v620 = vpack.c.b16 %v567, %v566
        %v621 = vpack.c.b16 %v569, %v568
        %v622 = vpack.c.b16 %v571, %v570
        %v623 = vpack.c.b16 %v573, %v572
        %v624 = vpack.c.b16 %v575, %v574
        %v625 = vpack.c.b16 %v577, %v576
        %v626 = vpack.c.b16 %v579, %v578
        %v627 = vpack.c.b16 %v581, %v580
        %v628 = vpack.c.b16 %v583, %v582
        %v629 = vpack.c.b16 %v585, %v584
        %v630 = vpack.c.b16 %v587, %v586
        %v631 = vpack.c.b16 %v589, %v588
        %v632 = vpack.c.b16 %v591, %v590
        %v633 = vpack.c.b16 %v593, %v592
        %v634 = vpack.c.b16 %v595, %v594
        %v635 = vpack.c.b16 %v597, %v596
        %v636 = vpack.c.b16 %v599, %v598
        %v637 = vpack.c.b16 %v601, %v600
        %vm674 = vcmask 523264
        %v676 = vsel %vm674, %v426, 0
        %v679 = vsel %vm674, %v431, 0
        %v682 = vsel %vm674, %v436, 0
        %v685 = vsel %vm674, %v441, 0
        %687 = vmatprep.subr.bf16.mxu0 0
        %688 = vmatpush1.bf16.msra.mxu0 %v602
        %689 = vmatprep.subr.bf16.mxu0 0
        %690 = vmatpush1.bf16.msra.mxu0 %v603
        %691 = vmatprep.subr.bf16.mxu0 0
        %692 = vmatpush1.bf16.msra.mxu0 %v604
        %693 = vmatprep.subr.bf16.mxu0 0
        %694 = vmatpush1.bf16.msra.mxu0 %v605
        %695 = vmatprep.subr.bf16.mxu0 0
        %696 = vmatpush1.bf16.msra.mxu0 %v606
        %697 = vmatprep.subr.bf16.mxu0 0
        %698 = vmatpush1.bf16.msra.mxu0 %v607
        %699 = vmatprep.subr.bf16.mxu0 0
        %700 = vmatpush1.bf16.msra.mxu0 %v608
        %701 = vmatprep.subr.bf16.mxu0 0
        %702 = vmatpush1.bf16.msra.mxu0 %v609
        %703 = vmatprep.subr.bf16.mxu0 0
        %704 = vmatpush1.bf16.msra.mxu0 %v610
        %705 = vmatprep.subr.bf16.mxu0 0
        %706 = vmatpush1.bf16.msra.mxu0 %v611
        %707 = vmatprep.subr.bf16.mxu0 0
        %708 = vmatpush1.bf16.msra.mxu0 %v612
        %709 = vmatprep.subr.bf16.mxu0 0
        %710 = vmatpush1.bf16.msra.mxu0 %v613
        %711 = vmatprep.subr.bf16.mxu0 0
        %712 = vmatpush1.bf16.msra.mxu0 %v614
        %713 = vmatprep.subr.bf16.mxu0 0
        %714 = vmatpush1.bf16.msra.mxu0 %v615
        %715 = vmatprep.subr.bf16.mxu0 0
        %716 = vmatpush1.bf16.msra.mxu0 %v616
        %717 = vmatprep.subr.bf16.mxu0 0
        %718 = vmatpush1.bf16.msra.mxu0 %v617
        %719 = vmatprep.mubr.bf16.mxu0 %v423
        %720 = vmatmul.mubr.bf16.gmra.mrb[0].mxu0 %v422
        %v721 = vpop.f32.mrb[0].mxu0
        %v722 = vadd.f32 0.0, %v721
        %v723 = vpop.f32.mrb[0].mxu0
        %v724 = vpop.f32.mrb[0].mxu0
        %v725 = vadd.f32 0.0, %v724
        %v726 = vpop.f32.mrb[0].mxu0
        %727 = vmatprep.mubr.bf16.mxu0 %v428
        %728 = vmatmul.mubr.bf16.gmra.mrb[0].mxu0 %v427
        %v729 = vpop.f32.mrb[0].mxu0
        %v730 = vadd.f32 0.0, %v729
        %v731 = vpop.f32.mrb[0].mxu0
        %v732 = vpop.f32.mrb[0].mxu0
        %v733 = vadd.f32 0.0, %v732
        %v734 = vpop.f32.mrb[0].mxu0
        %735 = vmatprep.mubr.bf16.mxu0 %v433
        %736 = vmatmul.mubr.bf16.gmra.mrb[0].mxu0 %v432
        %v737 = vpop.f32.mrb[0].mxu0
        %v738 = vadd.f32 0.0, %v737
        %v739 = vpop.f32.mrb[0].mxu0
        %v740 = vpop.f32.mrb[0].mxu0
        %v741 = vadd.f32 0.0, %v740
        %v742 = vpop.f32.mrb[0].mxu0
        %743 = vmatprep.mubr.bf16.mxu0 %v438
        %744 = vmatmul.mubr.bf16.gmra.mrb[0].mxu0 %v437
        %v745 = vpop.f32.mrb[0].mxu0
        %v746 = vadd.f32 0.0, %v745
        %v747 = vpop.f32.mrb[0].mxu0
        %v748 = vpop.f32.mrb[0].mxu0
        %v749 = vadd.f32 0.0, %v748
        %v750 = vpop.f32.mrb[0].mxu0
        %751 = vdwg.mxu0
        %752 = vmatprep.subr.bf16.mxu0 0
        %753 = vmatpush1.bf16.msra.mxu0 %v618
        %754 = vmatprep.subr.bf16.mxu0 0
        %755 = vmatpush1.bf16.msra.mxu0 %v619
        %756 = vmatprep.subr.bf16.mxu0 0
        %757 = vmatpush1.bf16.msra.mxu0 %v620
        %758 = vmatprep.subr.bf16.mxu0 0
        %759 = vmatpush1.bf16.msra.mxu0 %v621
        %760 = vmatprep.subr.bf16.mxu0 0
        %761 = vmatpush1.bf16.msra.mxu0 %v622
        %762 = vmatprep.subr.bf16.mxu0 0
        %763 = vmatpush1.bf16.msra.mxu0 %v623
        %764 = vmatprep.subr.bf16.mxu0 0
        %765 = vmatpush1.bf16.msra.mxu0 %v624
        %766 = vmatprep.subr.bf16.mxu0 0
        %767 = vmatpush1.bf16.msra.mxu0 %v625
        %768 = vmatprep.subr.bf16.mxu0 0
        %769 = vmatpush1.bf16.msra.mxu0 %v626
        %770 = vmatprep.subr.bf16.mxu0 0
        %771 = vmatpush1.bf16.msra.mxu0 %v627
        %772 = vmatprep.subr.bf16.mxu0 0
        %773 = vmatpush1.bf16.msra.mxu0 %v628
        %774 = vmatprep.subr.bf16.mxu0 0
        %775 = vmatpush1.bf16.msra.mxu0 %v629
        %776 = vmatprep.subr.bf16.mxu0 0
        %777 = vmatpush1.bf16.msra.mxu0 %v630
        %778 = vmatprep.subr.bf16.mxu0 0
        %779 = vmatpush1.bf16.msra.mxu0 %v631
        %780 = vmatprep.subr.bf16.mxu0 0
        %781 = vmatpush1.bf16.msra.mxu0 %v632
        %782 = vmatprep.subr.bf16.mxu0 0
        %783 = vmatpush1.bf16.msra.mxu0 %v633
        %784 = vmatprep.mubr.bf16.mxu0 %v425
        %785 = vmatmul.mubr.bf16.gmra.mrb[0].mxu0 %v424
        %v786 = vpop.f32.mrb[0].mxu0
        %v787 = vadd.f32 %v722, %v786
        %v788 = vpop.f32.mrb[0].mxu0
        %v789 = vpop.f32.mrb[0].mxu0
        %v790 = vadd.f32 %v725, %v789
        %v791 = vpop.f32.mrb[0].mxu0
        %792 = vmatprep.mubr.bf16.mxu0 %v430
        %793 = vmatmul.mubr.bf16.gmra.mrb[0].mxu0 %v429
        %v794 = vpop.f32.mrb[0].mxu0
        %v795 = vadd.f32 %v730, %v794
        %v796 = vpop.f32.mrb[0].mxu0
        %v797 = vpop.f32.mrb[0].mxu0
        %v798 = vadd.f32 %v733, %v797
        %v799 = vpop.f32.mrb[0].mxu0
        %800 = vmatprep.mubr.bf16.mxu0 %v435
        %801 = vmatmul.mubr.bf16.gmra.mrb[0].mxu0 %v434
        %v802 = vpop.f32.mrb[0].mxu0
        %v803 = vadd.f32 %v738, %v802
        %v804 = vpop.f32.mrb[0].mxu0
        %v805 = vpop.f32.mrb[0].mxu0
        %v806 = vadd.f32 %v741, %v805
        %v807 = vpop.f32.mrb[0].mxu0
        %808 = vmatprep.mubr.bf16.mxu0 %v440
        %809 = vmatmul.mubr.bf16.gmra.mrb[0].mxu0 %v439
        %v810 = vpop.f32.mrb[0].mxu0
        %v811 = vadd.f32 %v746, %v810
        %v812 = vpop.f32.mrb[0].mxu0
        %v813 = vpop.f32.mrb[0].mxu0
        %v814 = vadd.f32 %v749, %v813
        %v815 = vpop.f32.mrb[0].mxu0
        %816 = vdwg.mxu0
        %817 = vmatprep.subr.bf16.mxu0 0
        %818 = vmatpush1.bf16.msra.mxu0 %v634
        %819 = vmatprep.subr.bf16.mxu0 0
        %820 = vmatpush1.bf16.msra.mxu0 %v635
        %821 = vmatprep.subr.bf16.mxu0 0
        %822 = vmatpush1.bf16.msra.mxu0 %v636
        %823 = vmatprep.subr.bf16.mxu0 0
        %824 = vmatpush1.bf16.msra.mxu0 %v637
        %825 = vmatprep.subr.bf16.mxu0 0
        %826 = vmatpush1.bf16.msra.mxu0 0
        %827 = vmatprep.subr.bf16.mxu0 0
        %828 = vmatpush1.bf16.msra.mxu0 0
        %829 = vmatprep.subr.bf16.mxu0 0
        %830 = vmatpush1.bf16.msra.mxu0 0
        %831 = vmatprep.subr.bf16.mxu0 0
        %832 = vmatpush1.bf16.msra.mxu0 0
        %833 = vmatprep.subr.bf16.mxu0 0
        %834 = vmatpush1.bf16.msra.mxu0 0
        %835 = vmatprep.subr.bf16.mxu0 0
        %836 = vmatpush1.bf16.msra.mxu0 0
        %837 = vmatprep.subr.bf16.mxu0 0
        %838 = vmatpush1.bf16.msra.mxu0 0
        %839 = vmatprep.subr.bf16.mxu0 0
        %840 = vmatpush1.bf16.msra.mxu0 0
        %841 = vmatprep.subr.bf16.mxu0 0
        %842 = vmatpush1.bf16.msra.mxu0 0
        %843 = vmatprep.subr.bf16.mxu0 0
        %844 = vmatpush1.bf16.msra.mxu0 0
        %845 = vmatprep.subr.bf16.mxu0 0
        %846 = vmatpush1.bf16.msra.mxu0 0
        %847 = vmatprep.subr.bf16.mxu0 0
        %848 = vmatpush1.bf16.msra.mxu0 0
        %849 = vmatprep.mubr.bf16.mxu0 0
        %850 = vmatmul.mubr.bf16.gmra.mrb[0].mxu0 %v676
        %v851 = vpop.f32.mrb[0].mxu0
        %v852 = vadd.f32 %v787, %v851
        %v853 = vpop.f32.mrb[0].mxu0
        %v854 = vpop.f32.mrb[0].mxu0
        %v855 = vadd.f32 %v790, %v854
        %v856 = vpop.f32.mrb[0].mxu0
        %857 = vmatprep.mubr.bf16.mxu0 0
        %858 = vmatmul.mubr.bf16.gmra.mrb[0].mxu0 %v679
        %v859 = vpop.f32.mrb[0].mxu0
        %v860 = vadd.f32 %v795, %v859
        %v861 = vpop.f32.mrb[0].mxu0
        %v862 = vpop.f32.mrb[0].mxu0
        %v863 = vadd.f32 %v798, %v862
        %v864 = vpop.f32.mrb[0].mxu0
        %865 = vmatprep.mubr.bf16.mxu0 0
        %866 = vmatmul.mubr.bf16.gmra.mrb[0].mxu0 %v682
        %v867 = vpop.f32.mrb[0].mxu0
        %v868 = vadd.f32 %v803, %v867
        %v869 = vpop.f32.mrb[0].mxu0
        %v870 = vpop.f32.mrb[0].mxu0
        %v871 = vadd.f32 %v806, %v870
        %v872 = vpop.f32.mrb[0].mxu0
        %873 = vmatprep.mubr.bf16.mxu0 0
        %874 = vmatmul.mubr.bf16.gmra.mrb[0].mxu0 %v685
        %v875 = vpop.f32.mrb[0].mxu0
        %v876 = vadd.f32 %v811, %v875
        %v877 = vpop.f32.mrb[0].mxu0
        %v878 = vpop.f32.mrb[0].mxu0
        %v879 = vadd.f32 %v814, %v878
        %v880 = vpop.f32.mrb[0].mxu0
        %881 = vdwg.mxu0
        %v882 = vld [vmem:[%s256] sm:$0x1]
        %v884 = vlaneseq
        %v885 = vshrl.u32 %v884, 7
        %v886 = vsub.s32 0, %v885
        %v887 = vrot.slane %v882, %v886
        %v889 = vmul.f32 %v852, %v887
        %v890 = vmul.f32 %v855, %v887
        %v891 = vmul.f32 %v860, %v887
        %v892 = vmul.f32 %v863, %v887
        %v893 = vmul.f32 %v868, %v887
        %v894 = vmul.f32 %v871, %v887
        %v895 = vmul.f32 %v876, %v887
        %v896 = vmul.f32 %v879, %v887
        %v897 = vld [vmem:[%s259] sm:$0x1]
        %v899 = vlaneseq
        %v900 = vshrl.u32 %v899, 7
        %v901 = vsub.s32 0, %v900
        %v902 = vrot.slane %v897, %v901
        %v904 = vadd.f32 %v889, %v902
        %v905 = vadd.f32 %v890, %v902
        %v906 = vadd.f32 %v891, %v902
        %v907 = vadd.f32 %v892, %v902
        %v908 = vadd.f32 %v893, %v902
        %v909 = vadd.f32 %v894, %v902
        %v910 = vadd.f32 %v895, %v902
        %v911 = vadd.f32 %v896, %v902
        %v912 = vmax.f32 %v904, 0.0
        %v913 = vmax.f32 %v905, 0.0
        %v914 = vmax.f32 %v906, 0.0
        %v915 = vmax.f32 %v907, 0.0
        %v916 = vmax.f32 %v908, 0.0
        %v917 = vmax.f32 %v909, 0.0
        %v918 = vmax.f32 %v910, 0.0
        %v919 = vmax.f32 %v911, 0.0
        %v920 = vpack.c.bf16 %v913, %v912
        %v921 = vpack.c.bf16 %v915, %v914
        %v922 = vpack.c.bf16 %v917, %v916
        %v923 = vpack.c.bf16 %v919, %v918
        %v928 = vunpack.c.l.b16 %v920
        %v929 = vunpack.c.h.b16 %v920
        %v930 = vunpack.c.l.b16 %v921
        %v931 = vunpack.c.h.b16 %v921
        %v932 = vunpack.c.l.b16 %v922
        %v933 = vunpack.c.h.b16 %v922
        %v934 = vunpack.c.l.b16 %v923
        %v935 = vunpack.c.h.b16 %v923
        %v936 = vpack.c.b16 %v928, %v928
        %v937 = vpack.c.b16 %v929, %v929
        %v938 = vpack.c.b16 %v930, %v930
        %v939 = vpack.c.b16 %v931, %v931
        %v940 = vpack.c.b16 %v932, %v932
        %v941 = vpack.c.b16 %v933, %v933
        %v942 = vpack.c.b16 %v934, %v934
        %v943 = vpack.c.b16 %v935, %v935
        %952 = vst [vmem:[%s242] sm:$0xf] %v936
        %953 = vst [vmem:[%s242 + $0x4] sm:$0xf] %v937
        %954 = vst [vmem:[%s242 + $0x8] sm:$0xf] %v938
        %955 = vst [vmem:[%s242 + $0xc] sm:$0xf] %v939
        %956 = vst [vmem:[%s242 + $0x10] sm:$0xf] %v940
        %957 = vst [vmem:[%s242 + $0x14] sm:$0xf] %v941
        %958 = vst [vmem:[%s242 + $0x18] sm:$0xf] %v942
        %959 = vst [vmem:[%s242 + $0x1c] sm:$0xf] %v943
        %s960 = sand.u32 %s144, 1
        %s961 = scalar_lea.sflag [#allocation3], %s960
        %s962 = sand.u32 %s144, 1
        %s963 = smul.addr %s962, 32
        %s964 = scalar_lea.vmem [#allocation2], %s963
        // Predicated region
        $region37: #{tpu_custom_call.1} parent=35 // pred_check
          %p965 = pneg %p154
        $region38: #{tpu_custom_call.1} parent=35 // pred_check_branch
          %967 = sbr.rel (%p965) target = $region40
        $region39: #{tpu_custom_call.1} parent=35 // pred_region
          %s968 = smul.u32 8, %s22
          %s970 = ssub.s32 512, 512
          %971 = vsyncadd %s961, %s970
          %s972 = sadd.s32 %s23, %s968
          %s973 = smul.addr %s972, 64
          %s974 = scalar_lea.hbm %s4, %s973
          %s975 = sshll.u32 %s964, 4
          %s976 = int_to_ptr.vmem [resolvable:$true] %s975
          %981 = dma.vmem_to_hbm [thread:$0]  %s976, 512, %s974, %s961, 64, 64, 4
        $region40: #{tpu_custom_call.1} parent=35 // pred_fallthru
          _
      $region36: #{tpu_custom_call.1} parent=5 // pred_fallthru
        _
      %p982 = scmp.le.s32.totalorder 2, %s13
      // Predicated region
      $region41: #{tpu_custom_call.1} parent=5 // pred_check
        %p983 = pneg %p982
      $region42: #{tpu_custom_call.1} parent=5 // pred_check_branch
        %985 = sbr.rel (%p983) target = $region44
      $region43: #{tpu_custom_call.1} parent=5 // pred_region
        %s986 = ssub.s32 %s13, 2
        // Predicated region
        $region45: #{tpu_custom_call.1} parent=43 // pred_check
          %p987 = pneg %p160
        $region46: #{tpu_custom_call.1} parent=43 // pred_check_branch
          %989 = sbr.rel (%p987) target = $region48
        $region47: #{tpu_custom_call.1} parent=43 // pred_region
          %s990 = sand.u32 %s145, 1
          %s991 = scalar_lea.sflag [#allocation3], %s990
          %s992 = sand.u32 %s145, 1
          %s993 = smul.addr %s992, 32
          %s994 = scalar_lea.vmem [#allocation2], %s993
          %995 = dma.done %s991, 512
        $region48: #{tpu_custom_call.1} parent=43 // pred_fallthru
          _
      $region44: #{tpu_custom_call.1} parent=5 // pred_fallthru
        _
    $region6: #{tpu_custom_call.1} parent=1 // loop_footer
      %s17 = sadd.s32 1, %s13
    $region7: #{tpu_custom_call.1} parent=1 // loop_footer_branch
      %12 = sbr.rel target = $region3
    $region8: #{tpu_custom_call.1} parent=1 // loop_exit
      _
    %996 = vsyncpa [#allocation3], 1
    %s997 = scalar_lea.sflag [#allocation3], 1
    %998 = vsyncpa %s997, 1

</llo_original>
